<compile_context>
chip_gen: v5e
topology: v5e:2x2
jax: 0.10.0
libtpu: 0.0.40
codegen_flags: <defaults>
</compile_context>

<pallas_src>
import numpy as np
import jax
import jax.numpy as jnp
from jax.experimental import pallas as pl
from jax.experimental.pallas import tpu as pltpu


def _round_up(x, m):
    return ((x + m - 1) // m) * m


def _linear_kernel(xt_ref, table_ref, w_ref, out_ref):
    """Linear logit for one batch tile; batch on the lane axis.

    xt_ref:    [Fs+Dd, TB] f32  feature-major input tile; rows [0, Fs) hold the
                                sparse ids stored as float, rows [Fs, Fs+Dd)
                                hold the dense values.
    table_ref: [Vp, Fs]    f32  linear embedding table, vocab on sublanes
                                (grid-invariant; never re-DMA'd after step 0).
    w_ref:     [Fs+Dd, 1]  f32  dense weight with zeros in the id rows
                                (grid-invariant).
    out_ref:   [1, TB]     f32  lane-dense logit row.
    """
    Vp, Fs = table_ref.shape
    TB = xt_ref.shape[1]

    xt = xt_ref[...]                                               # [F, TB]
    ids = xt[:Fs, :].astype(jnp.int32)                             # [Fs, TB] (== .long())
    vocab = jax.lax.broadcasted_iota(jnp.int32, (Vp, TB), 0)       # vocab id per sublane

    # Sparse part: compare/select into one [Vp, TB] accumulator across all
    # features (VPU), then a SINGLE sublane reduce (XLU) -- the per-feature
    # reduces of the previous version are hoisted out of the loop.
    acc = jnp.zeros((Vp, TB), jnp.float32)
    for f in range(Fs):                                            # Fs is small & static
        match = vocab == ids[f:f + 1, :]                           # [Vp, TB]
        acc = acc + jnp.where(match, table_ref[:, f:f + 1], 0.0)   # select table column f
    sparse_logit = jnp.sum(acc, axis=0, keepdims=True)             # [1, TB]

    # Dense part: w has zeros in the id rows, so the already-loaded full tile
    # can be used without slicing across the sublane-tile boundary.
    dense_logit = jnp.sum(xt * w_ref[...], axis=0, keepdims=True)  # [1, TB]

    out_ref[...] = sparse_logit + dense_logit                      # unmasked lane-dense store


def linear_forward_feature_major(xt, tables, dense_weight, *,
                                 block_batch=8192, core_parallel=False):
    """Fast path: xt is feature-major [Fs+Dd, B] float32 (sparse id rows first,
    ids stored as float like the PyTorch dataset).  tables: [Fs, V] float32
    (dim-1 linear embeddings, squeezed).  dense_weight: [Dd, 1] float32.
    Returns the linear logit [B, 1] float32."""
    F_total, B = xt.shape
    Fs, V = tables.shape
    Dd = dense_weight.shape[0]
    assert F_total == Fs + Dd

    # Large batch tile (multiple of 128, batch on lanes) to amortize the
    # ~0.35 us fixed per-grid-step pipeline cost.
    TB = max(128, min(_round_up(block_batch, 128), _round_up(B, 128)))
    B_pad = _round_up(B, TB)
    G = B_pad // TB
    Vp = _round_up(V, 8)                                           # vocab on sublanes

    xt = xt.astype(jnp.float32)
    if B_pad != B:
        # Only when B is not a tile multiple.  Pad lanes are zero -> they hit
        # vocab row 0 of each table, but those lanes are sliced off below.
        xt = jnp.pad(xt, ((0, 0), (0, B_pad - B)))

    # Tiny grid-invariant params.
    table_t = jnp.pad(tables.astype(jnp.float32).T, ((0, Vp - V), (0, 0)))   # [Vp, Fs]
    w_full = jnp.concatenate(
        [jnp.zeros((Fs, 1), jnp.float32), dense_weight.astype(jnp.float32)],
        axis=0)                                                               # [Fs+Dd, 1]

    grid_spec = pltpu.PrefetchScalarGridSpec(
        num_scalar_prefetch=0,
        grid=(G,),
        in_specs=[
            pl.BlockSpec((F_total, TB), lambda i: (0, i)),         # X tile
            # Grid-invariant blocks below: their block index never changes, so
            # the pipeline never re-DMAs them after step 0.  At production
            # vocab they should be single-buffered
            # (pipeline_mode=pl.Buffered(buffer_count=1)) or moved to the
            # HBM-resident gather path (see TODO at top of file).
            pl.BlockSpec((Vp, Fs), lambda i: (0, 0)),              # table (resident)
            pl.BlockSpec((F_total, 1), lambda i: (0, 0)),          # dense weight (resident)
        ],
        out_specs=pl.BlockSpec((1, TB), lambda i: (0, i)),         # lane-dense logit row
    )

    # CORE_PARALLEL shards the batch tiles across both TensorCores on v7x;
    # on single-TC chips (v5e/v6e) plain PARALLEL is used.
    sem = pltpu.CORE_PARALLEL if core_parallel else pltpu.PARALLEL

    flops = int(B_pad) * (3 * Fs * Vp + 2 * F_total + 2)
    bytes_accessed = 4 * (F_total * int(B_pad) + int(B_pad) + Vp * Fs + F_total)

    out = pl.pallas_call(
        _linear_kernel,
        out_shape=jax.ShapeDtypeStruct((1, B_pad), jnp.float32),
        grid_spec=grid_spec,
        compiler_params=pltpu.CompilerParams(
            dimension_semantics=(sem,),
            vmem_limit_bytes=32 * 1024 * 1024),                    # v5e default is only 16 MiB
        cost_estimate=pl.CostEstimate(
            flops=flops, transcendentals=0, bytes_accessed=bytes_accessed),
    )(xt, table_t, w_full)

    return out[0, :B].reshape(B, 1)


def linear_forward(X, tables, dense_weight, vocab_size=None, *,
                   block_batch=8192, core_parallel=False):
    """Module-contract entry point: X is [B, Fs + Dd] with the sparse id
    columns first (ids stored as float, as in the PyTorch dataset).

    The single transpose below is the only wrapper-side layout op; producers
    that already have columnar (feature-major) data should call
    `linear_forward_feature_major` directly and pay zero layout cost.
    """
    Fs, V = tables.shape
    Dd = dense_weight.shape[0]
    assert X.shape[1] == Fs + Dd
    if vocab_size is not None:
        assert V == vocab_size
    xt = X.astype(jnp.float32).T                                   # [Fs+Dd, B]
    return linear_forward_feature_major(
        xt, tables, dense_weight,
        block_batch=block_batch, core_parallel=core_parallel)


if __name__ == "__main__":
    # --- synthetic feature config (matches the module __init__ shapes) ------
    B = 8            # batch
    F_SPARSE = 4     # number of SparseFeat columns (linear embedding dim = 1)
    VOCAB = 16       # vocabulary size per sparse feature
    D_DENSE = 8      # sum of DenseFeat dimensions
    INIT_STD = 1e-4

    key = jax.random.PRNGKey(0)
    k_idx, k_dense, k_tab, k_w = jax.random.split(key, 4)

    # Deterministic "parameters": embedding_dict (dim-1 tables) + dense weight.
    tables = INIT_STD * jax.random.normal(k_tab, (F_SPARSE, VOCAB), jnp.float32)
    dense_weight = INIT_STD * jax.random.normal(k_w, (D_DENSE, 1), jnp.float32)

    # Input X: sparse id columns (as float, like the PyTorch dataset) + dense values.
    sparse_ids = jax.random.randint(k_idx, (B, F_SPARSE), 0, VOCAB).astype(jnp.float32)
    dense_vals = jax.random.normal(k_dense, (B, D_DENSE), jnp.float32)
    X = jnp.concatenate([sparse_ids, dense_vals], axis=1)          # [B, Fs + Dd]

    def reference(Xr):
        # Pure-JAX mirror of the PyTorch forward.
        idx = Xr[:, :F_SPARSE].astype(jnp.int32)
        sparse_emb = jnp.take_along_axis(tables.T, idx, axis=0)    # [B, Fs]
        return (jnp.sum(sparse_emb, axis=-1, keepdims=True)
                + Xr[:, F_SPARSE:] @ dense_weight)                 # [B, 1]

    out = jax.block_until_ready(linear_forward(X, tables, dense_weight, VOCAB))
    assert out.shape == (B, 1) and out.dtype == jnp.float32
    np.testing.assert_allclose(np.asarray(out), np.asarray(reference(X)),
                               rtol=1e-5, atol=1e-6)

    # Multi-tile + ragged-batch check (2 tiles of 256 lanes, batch padded).
    B2 = 300
    k_idx2, k_dense2 = jax.random.split(jax.random.PRNGKey(1), 2)
    X2 = jnp.concatenate(
        [jax.random.randint(k_idx2, (B2, F_SPARSE), 0, VOCAB).astype(jnp.float32),
         jax.random.normal(k_dense2, (B2, D_DENSE), jnp.float32)], axis=1)
    out2 = jax.block_until_ready(
        linear_forward(X2, tables, dense_weight, VOCAB, block_batch=256))
    assert out2.shape == (B2, 1)
    np.testing.assert_allclose(np.asarray(out2), np.asarray(reference(X2)),
                               rtol=1e-5, atol=1e-6)

    print("KERNEL_OK")
</pallas_src>

<mosaic_0001>
module attributes {stable_mosaic.version = 11 : i64} {
  func.func @_linear_kernel(%arg0: i32, %arg1: memref<12x128xf32, #tpu.memory_space<vmem>>, %arg2: memref<16x4xf32, #tpu.memory_space<vmem>>, %arg3: memref<12x1xf32, #tpu.memory_space<vmem>>, %arg4: memref<1x128xf32, #tpu.memory_space<vmem>>) attributes {dimension_semantics = [#tpu.dimension_semantics<parallel>], iteration_bounds = array<i64: 1>, scalar_prefetch = 0 : i64, scratch_operands = 0 : i64, tpu.core_type = #tpu.core_type<tc>, window_params = [{transform_indices = @transform_0, window_bounds = array<i64: 12, 128>}, {pipeline_mode = #tpu.pipeline_mode<synchronous>, transform_indices = @transform_1, window_bounds = array<i64: 16, 4>}, {pipeline_mode = #tpu.pipeline_mode<synchronous>, transform_indices = @transform_2, window_bounds = array<i64: 12, 1>}, {transform_indices = @transform_3, window_bounds = array<i64: 1, 128>}]} {
    %c0 = arith.constant 0 : index
    %c0_0 = arith.constant 0 : index
    %0 = vector.load %arg1[%c0, %c0_0] : memref<12x128xf32, #tpu.memory_space<vmem>>, vector<12x128xf32>
    %1 = vector.extract_strided_slice %0 {offsets = [0, 0], sizes = [4, 128], strides = [1, 1]} : vector<12x128xf32> to vector<4x128xf32>
    %2 = arith.fptosi %1 : vector<4x128xf32> to vector<4x128xi32>
    %3 = tpu.iota {dimensions = array<i32: 0>} : vector<16x128xi32>
    %cst = arith.constant 0.000000e+00 : f32
    %4 = vector.broadcast %cst : f32 to vector<16x128xf32>
    %5 = vector.extract_strided_slice %2 {offsets = [0, 0], sizes = [1, 128], strides = [1, 1]} : vector<4x128xi32> to vector<1x128xi32>
    %6 = vector.broadcast %5 : vector<1x128xi32> to vector<16x128xi32>
    %7 = arith.cmpi eq, %3, %6 : vector<16x128xi32>
    %c0_1 = arith.constant 0 : index
    %c0_2 = arith.constant 0 : index
    %8 = vector.load %arg2[%c0_1, %c0_2] : memref<16x4xf32, #tpu.memory_space<vmem>>, vector<16x1xf32>
    %cst_3 = arith.constant 0.000000e+00 : f32
    %9 = vector.shape_cast %8 : vector<16x1xf32> to vector<16x1xf32>
    %10 = vector.broadcast %9 : vector<16x1xf32> to vector<16x128xf32>
    %11 = vector.broadcast %cst_3 : f32 to vector<16x128xf32>
    %12 = arith.select %7, %10, %11 : vector<16x128xi1>, vector<16x128xf32>
    %13 = arith.addf %4, %12 : vector<16x128xf32>
    %14 = vector.extract_strided_slice %2 {offsets = [1, 0], sizes = [1, 128], strides = [1, 1]} : vector<4x128xi32> to vector<1x128xi32>
    %15 = vector.broadcast %14 : vector<1x128xi32> to vector<16x128xi32>
    %16 = arith.cmpi eq, %3, %15 : vector<16x128xi32>
    %c0_4 = arith.constant 0 : index
    %c1 = arith.constant 1 : index
    %17 = vector.load %arg2[%c0_4, %c1] : memref<16x4xf32, #tpu.memory_space<vmem>>, vector<16x1xf32>
    %cst_5 = arith.constant 0.000000e+00 : f32
    %18 = vector.shape_cast %17 : vector<16x1xf32> to vector<16x1xf32>
    %19 = vector.broadcast %18 : vector<16x1xf32> to vector<16x128xf32>
    %20 = vector.broadcast %cst_5 : f32 to vector<16x128xf32>
    %21 = arith.select %16, %19, %20 : vector<16x128xi1>, vector<16x128xf32>
    %22 = arith.addf %13, %21 : vector<16x128xf32>
    %23 = vector.extract_strided_slice %2 {offsets = [2, 0], sizes = [1, 128], strides = [1, 1]} : vector<4x128xi32> to vector<1x128xi32>
    %24 = vector.broadcast %23 : vector<1x128xi32> to vector<16x128xi32>
    %25 = arith.cmpi eq, %3, %24 : vector<16x128xi32>
    %c0_6 = arith.constant 0 : index
    %c2 = arith.constant 2 : index
    %26 = vector.load %arg2[%c0_6, %c2] : memref<16x4xf32, #tpu.memory_space<vmem>>, vector<16x1xf32>
    %cst_7 = arith.constant 0.000000e+00 : f32
    %27 = vector.shape_cast %26 : vector<16x1xf32> to vector<16x1xf32>
    %28 = vector.broadcast %27 : vector<16x1xf32> to vector<16x128xf32>
    %29 = vector.broadcast %cst_7 : f32 to vector<16x128xf32>
    %30 = arith.select %25, %28, %29 : vector<16x128xi1>, vector<16x128xf32>
    %31 = arith.addf %22, %30 : vector<16x128xf32>
    %32 = vector.extract_strided_slice %2 {offsets = [3, 0], sizes = [1, 128], strides = [1, 1]} : vector<4x128xi32> to vector<1x128xi32>
    %33 = vector.broadcast %32 : vector<1x128xi32> to vector<16x128xi32>
    %34 = arith.cmpi eq, %3, %33 : vector<16x128xi32>
    %c0_8 = arith.constant 0 : index
    %c3 = arith.constant 3 : index
    %35 = vector.load %arg2[%c0_8, %c3] : memref<16x4xf32, #tpu.memory_space<vmem>>, vector<16x1xf32>
    %cst_9 = arith.constant 0.000000e+00 : f32
    %36 = vector.shape_cast %35 : vector<16x1xf32> to vector<16x1xf32>
    %37 = vector.broadcast %36 : vector<16x1xf32> to vector<16x128xf32>
    %38 = vector.broadcast %cst_9 : f32 to vector<16x128xf32>
    %39 = arith.select %34, %37, %38 : vector<16x128xi1>, vector<16x128xf32>
    %40 = arith.addf %31, %39 : vector<16x128xf32>
    %cst_10 = arith.constant dense<0.000000e+00> : vector<128xf32>
    %41 = vector.multi_reduction <add>, %40, %cst_10 [0] : vector<16x128xf32> to vector<128xf32>
    %42 = vector.shape_cast %41 : vector<128xf32> to vector<1x128xf32>
    %c0_11 = arith.constant 0 : index
    %c0_12 = arith.constant 0 : index
    %43 = vector.load %arg3[%c0_11, %c0_12] : memref<12x1xf32, #tpu.memory_space<vmem>>, vector<12x1xf32>
    %44 = vector.broadcast %43 : vector<12x1xf32> to vector<12x128xf32>
    %45 = arith.mulf %0, %44 : vector<12x128xf32>
    %cst_13 = arith.constant dense<0.000000e+00> : vector<128xf32>
    %46 = vector.multi_reduction <add>, %45, %cst_13 [0] : vector<12x128xf32> to vector<128xf32>
    %47 = vector.shape_cast %46 : vector<128xf32> to vector<1x128xf32>
    %48 = arith.addf %42, %47 : vector<1x128xf32>
    %c0_14 = arith.constant 0 : index
    %c0_15 = arith.constant 0 : index
    %49 = vector.load %arg4[%c0_14, %c0_15] : memref<1x128xf32, #tpu.memory_space<vmem>>, vector<1x128xf32>
    tpu.vector_store %arg4[%c0_14, %c0_15], %48 {strides = array<i32>} : memref<1x128xf32, #tpu.memory_space<vmem>>, vector<1x128xf32>,
    return
  }
  func.func @transform_0(%arg0: i32) -> (i32, i32) {
    %c0_i32 = arith.constant 0 : i32
    %c0_i32_0 = arith.constant 0 : i32
    return %c0_i32, %arg0 : i32, i32
  }
  func.func @transform_1(%arg0: i32) -> (i32, i32) {
    %c0_i32 = arith.constant 0 : i32
    %c0_i32_0 = arith.constant 0 : i32
    %c0_i32_1 = arith.constant 0 : i32
    return %c0_i32, %c0_i32_0 : i32, i32
  }
  func.func @transform_2(%arg0: i32) -> (i32, i32) {
    %c0_i32 = arith.constant 0 : i32
    %c0_i32_0 = arith.constant 0 : i32
    %c0_i32_1 = arith.constant 0 : i32
    return %c0_i32, %c0_i32_0 : i32, i32
  }
  func.func @transform_3(%arg0: i32) -> (i32, i32) {
    %c0_i32 = arith.constant 0 : i32
    %c0_i32_0 = arith.constant 0 : i32
    return %c0_i32, %arg0 : i32, i32
  }
}

</mosaic_0001>

<llo_original>
// kernel: tpu_custom_call.1
$region0: #{tpu_custom_call.1}
  #allocation0 [shape = 'u32[]', space=smem, size = 0x4, offset = 0x4, fixed_abs, tag = 'smem constant byte address 0x4 - core index']
  #allocation1 [shape = 'u32[72,128]{1,0:T(1,128)}', space=vmem, size = 0x9000, scoped, tag = 'internal scratch']
  %s0 = inlined_call_operand.vmem [shape: f32[12,128], index: 0, kind: input, shape index: {}]
  %s1 = inlined_call_operand.vmem [shape: f32[16,4], index: 1, kind: input, shape index: {}]
  %s2 = inlined_call_operand.vmem [shape: f32[12,1], index: 2, kind: input, shape index: {}]
  %s3 = inlined_call_operand.hbm [shape: f32[1,128], index: 3, kind: output, shape index: {}]
  %s4 = sld [smem:[#allocation0]]
  $region22: #{tpu_custom_call.1} parent=0
    _
  %s6 = ssub.s32 1, %s4
  %s7 = scalar_select 0, %s6, %s4
  $region1: #{tpu_custom_call.1} parent=0
    #allocation2 [shape = 'u8[512]{0}', space=vmem, size = 0x400, scoped, tag = 'output window, operand 0, single buffered']
    #allocation3 [shape = 's32[1]{0}', space=sflag, size = 0x4, scoped, tag = 'scoped memory for tpu_custom_call.1']
    %8 = vsyncpa [#allocation3], 0
    // Predicated region
    $region2: #{tpu_custom_call.1} parent=1 // pred_check
      _
    $region3: #{tpu_custom_call.1} parent=1 // pred_check_branch
      %10 = sbr.rel (0) target = $region5
    $region4: #{tpu_custom_call.1} parent=1 // pred_region
      _
    $region5: #{tpu_custom_call.1} parent=1 // pred_fallthru
      _
    // Predicated region
    $region6: #{tpu_custom_call.1} parent=1 // pred_check
      _
    $region7: #{tpu_custom_call.1} parent=1 // pred_check_branch
      %12 = sbr.rel (0) target = $region9
    $region8: #{tpu_custom_call.1} parent=1 // pred_region
      _
    $region9: #{tpu_custom_call.1} parent=1 // pred_fallthru
      _
    // Predicated region
    $region10: #{tpu_custom_call.1} parent=1 // pred_check
      _
    $region11: #{tpu_custom_call.1} parent=1 // pred_check_branch
      %14 = sbr.rel (0) target = $region13
    $region12: #{tpu_custom_call.1} parent=1 // pred_region
      _
    $region13: #{tpu_custom_call.1} parent=1 // pred_fallthru
      _
    %v15 = vld [vmem:[%s0] sm:$0xff]
    %v16 = vld [vmem:[%s0 + $0x8] sm:$0xf]
    %v17 = vcvt.f32.s32.to.zero.pseudo %v15
    %v18 = vlaneseq
    %v19 = vshrl.u32 %v18, 7
    %v20 = vadd.s32 %v19, 8
    %v21 = vperm.slane %v17, 0
    %vm22 = vcmp.eq.s32.totalorder %v19, %v21
    %vm23 = vcmp.eq.s32.totalorder %v20, %v21
    %v24 = vld [vmem:[%s1] sm:$0xff]
    %v25 = vld [vmem:[%s1 + $0x8] sm:$0xff]
    %27 = vset.pattern.permute.xlu0 0
    %28 = vperm.xlu0 %27, %v24
    %v29 = vpop.permute.xlu0 %28
    %32 = vset.pattern.permute.xlu0 0
    %33 = vperm.xlu0 %32, %v25
    %v34 = vpop.permute.xlu0 %33
    %v36 = vsel %vm22, %v29, 0.0
    %v37 = vsel %vm23, %v34, 0.0
    %v38 = vadd.f32 %v36, 0.0
    %v39 = vadd.f32 %v37, 0.0
    %v40 = vperm.slane %v17, 1
    %vm41 = vcmp.eq.s32.totalorder %v19, %v40
    %vm42 = vcmp.eq.s32.totalorder %v20, %v40
    %43 = vset.pattern.permute.xlu0 1
    %44 = vperm.xlu0 %43, %v24
    %v45 = vpop.permute.xlu0 %44
    %47 = vset.pattern.permute.xlu0 1
    %48 = vperm.xlu0 %47, %v25
    %v49 = vpop.permute.xlu0 %48
    %v51 = vsel %vm41, %v45, 0.0
    %v52 = vsel %vm42, %v49, 0.0
    %v53 = vadd.f32 %v38, %v51
    %v54 = vadd.f32 %v39, %v52
    %v55 = vperm.slane %v17, 2
    %vm56 = vcmp.eq.s32.totalorder %v19, %v55
    %vm57 = vcmp.eq.s32.totalorder %v20, %v55
    %58 = vset.pattern.permute.xlu0 2
    %59 = vperm.xlu0 %58, %v24
    %v60 = vpop.permute.xlu0 %59
    %62 = vset.pattern.permute.xlu0 2
    %63 = vperm.xlu0 %62, %v25
    %v64 = vpop.permute.xlu0 %63
    %v66 = vsel %vm56, %v60, 0.0
    %v67 = vsel %vm57, %v64, 0.0
    %v68 = vadd.f32 %v53, %v66
    %v69 = vadd.f32 %v54, %v67
    %v70 = vperm.slane %v17, 3
    %vm71 = vcmp.eq.s32.totalorder %v19, %v70
    %vm72 = vcmp.eq.s32.totalorder %v20, %v70
    %73 = vset.pattern.permute.xlu0 3
    %74 = vperm.xlu0 %73, %v24
    %v75 = vpop.permute.xlu0 %74
    %77 = vset.pattern.permute.xlu0 3
    %78 = vperm.xlu0 %77, %v25
    %v79 = vpop.permute.xlu0 %78
    %v81 = vsel %vm71, %v75, 0.0
    %v82 = vsel %vm72, %v79, 0.0
    %v83 = vadd.f32 %v68, %v81
    %v84 = vadd.f32 %v69, %v82
    %v85 = vadd.f32 %v83, %v84
    %v86 = vrot.slane %v85, 4
    %v87 = vadd.f32 %v85, %v86
    %v88 = vrot.slane %v87, 2
    %v89 = vadd.f32 %v87, %v88
    %v90 = vrot.slane %v89, 1
    %v91 = vadd.f32 %v89, %v90
    %v92 = vld [vmem:[%s2] sm:$0xff]
    %v93 = vld [vmem:[%s2 + $0x8] sm:$0xf]
    %95 = vset.pattern.permute.xlu0 0
    %96 = vperm.xlu0 %95, %v92
    %v97 = vpop.permute.xlu0 %96
    %100 = vset.pattern.permute.xlu0 0
    %101 = vperm.xlu0 %100, %v93
    %v102 = vpop.permute.xlu0 %101
    %v104 = vmul.f32 %v15, %v97
    %v105 = vmul.f32 %v16, %v102
    %vm106 = vcmask 1043456
    %v107 = vsel %vm106, %v105, 0.0
    %v108 = vadd.f32 %v104, %v107
    %v109 = vrot.slane %v108, 4
    %v110 = vadd.f32 %v108, %v109
    %v111 = vrot.slane %v110, 2
    %v112 = vadd.f32 %v110, %v111
    %v113 = vrot.slane %v112, 1
    %v114 = vadd.f32 %v112, %v113
    %v115 = vadd.f32 %v91, %v114
    %116 = vst [vmem:[#allocation2] sm:$0x1] %v115
    // Predicated region
    $region14: #{tpu_custom_call.1} parent=1 // pred_check
      _
    $region15: #{tpu_custom_call.1} parent=1 // pred_check_branch
      %118 = sbr.rel (0) target = $region17
    $region16: #{tpu_custom_call.1} parent=1 // pred_region
      %120 = vsyncadd [#allocation3], 0
      %s122 = sshll.u32 [#allocation2], 4
      %s123 = int_to_ptr.vmem [resolvable:$true] %s122
      %s124 = sshll.u32 %s3, 4
      %s125 = int_to_ptr.hbm [resolvable:$true] %s124
      %127 = dma.vmem_to_hbm [thread:$0]  %s123, 16, %s125, [#allocation3]
    $region17: #{tpu_custom_call.1} parent=1 // pred_fallthru
      _
    // Predicated region
    $region18: #{tpu_custom_call.1} parent=1 // pred_check
      _
    $region19: #{tpu_custom_call.1} parent=1 // pred_check_branch
      %129 = sbr.rel (0) target = $region21
    $region20: #{tpu_custom_call.1} parent=1 // pred_region
      %131 = dma.done [#allocation3], 16
    $region21: #{tpu_custom_call.1} parent=1 // pred_fallthru
      _
    %132 = vsyncpa [#allocation3], 1

</llo_original>
